<compile_context>
chip_gen: v5e
topology: v5e:2x2
jax: 0.10.0
libtpu: 0.0.40
codegen_flags: <defaults>
</compile_context>

<pallas_src>
import jax
import jax.numpy as jnp
from jax.experimental import pallas as pl
from jax.experimental.pallas import tpu as pltpu

_LANE = 128
_MAX_COLS = 2048          # lane-dense column width cap (aligned path)
_MiB = 1024 * 1024


def _tanh_kernel(x_ref, o_ref):
    # Pure elementwise hot path: tanh lowers to the EUP transcendental unit,
    # which has its own VLIW slot, so the kernel stays HBM-bandwidth bound.
    o_ref[...] = jnp.tanh(x_ref[...])


def _block_target_bytes():
    """Per-generation block-size target (v7x ~8 MiB, v6e ~4 MiB, v5e ~2 MiB)."""
    kind = ""
    try:
        kind = jax.devices()[0].device_kind.lower()
    except Exception:
        pass
    if "v7" in kind:
        return 8 * _MiB    # amortize the ~0.35 us/step overhead at ~3.2 TB/s
    if "v5 lite" in kind or "v5lite" in kind or "v5e" in kind:
        return 2 * _MiB    # 16 MiB scoped-VMEM default; bigger buys ~nothing
    return 4 * _MiB        # v6e and default


def _choose_cols(total, sub_pack):
    """Lane-dense column width (multiple of 128) for the 128-aligned path."""
    for c in range(_MAX_COLS, 0, -_LANE):
        if total % (c * sub_pack) == 0:
            return c                       # rows also sublane-aligned
    for c in range(_MAX_COLS, 0, -_LANE):
        if total % c == 0:
            return c                       # rows ragged in sublanes (masked)
    return _LANE                           # unreachable: total % 128 == 0 here


def _row_tile(rows, sub_pack, cols, dsize, target_bytes):
    """~target_bytes per block, sublane-aligned; split mid-size inputs into
    >=2 (prefer 4) blocks so DMA/compute overlap and both v7x TCs stay busy."""
    tr = max(sub_pack, (target_bytes // (cols * dsize)) // sub_pack * sub_pack)
    if tr >= rows:
        if rows <= 4 * sub_pack:
            return rows                    # tiny input: one full block is fine
        want = 4 if rows >= 8 * sub_pack else 2
        tr = max(sub_pack, (rows // want) // sub_pack * sub_pack)
    return tr


def _lane_tile(total, dsize, target_bytes):
    """Block width for the (1, N) ragged path (N not a multiple of 128)."""
    bc = max(_LANE, (target_bytes // dsize) // _LANE * _LANE)
    if bc >= total:
        if total <= 64 * 1024:
            return total                   # single full-extent block
        # mid-size: keep >=2 blocks; the last one is ragged (DMA-masked).
        bc = ((total + 1) // 2 + _LANE - 1) // _LANE * _LANE
    return bc


def _run_tanh(x2, block_shape, grid, index_map, total, dsize):
    block_bytes = block_shape[0] * block_shape[1] * dsize
    # Double buffering: 2 in + 2 out buffers of one block each, plus headroom.
    vmem_limit = int(min(48 * _MiB, 4 * block_bytes + 16 * _MiB))
    return pl.pallas_call(
        _tanh_kernel,
        out_shape=jax.ShapeDtypeStruct(x2.shape, x2.dtype),
        grid_spec=pltpu.PrefetchScalarGridSpec(
            num_scalar_prefetch=0,
            grid=grid,
            in_specs=[pl.BlockSpec(block_shape, index_map)],
            out_specs=pl.BlockSpec(block_shape, index_map),
        ),
        # NOTE: on v7x, confirm via xprof that "parallel" shards this axis
        # across both TensorCores; if not, switch to pltpu.CORE_PARALLEL on a
        # leading grid axis of size 2 with an explicit row split.
        compiler_params=pltpu.CompilerParams(
            dimension_semantics=("parallel",),
            vmem_limit_bytes=vmem_limit,
        ),
        cost_estimate=pl.CostEstimate(
            flops=0,
            transcendentals=total,
            bytes_accessed=2 * total * dsize,
        ),
    )(x2)


def pallas_tanh(x):
    """Elementwise tanh via a Pallas TPU kernel (arbitrary shape, float dtype)."""
    orig_shape = x.shape
    dtype = x.dtype
    total = int(x.size)
    if total == 0:
        return x

    dsize = jnp.dtype(dtype).itemsize
    # Sublane packing: 8 rows (f32), 16 (bf16/f16), 32 (1-byte dtypes).
    sub_pack = 8 * max(1, 4 // dsize)
    target = _block_target_bytes()
    flat = x.reshape(-1)

    if total % _LANE == 0:
        # Fast path: lane-dense (rows, cols) slab, zero host-side copies.
        cols = _choose_cols(total, sub_pack)
        rows = total // cols
        tr = _row_tile(rows, sub_pack, cols, dsize, target)
        out = _run_tanh(
            flat.reshape(rows, cols),
            (tr, cols),
            (pl.cdiv(rows, tr),),
            lambda i: (i, 0),
            total,
            dsize,
        )
    else:
        # Ragged path: element count not a multiple of 128.  View as (1, N)
        # and stream lane-blocked tiles; the ragged last block is handled by
        # the bounds-masked block DMA (OOB reads are garbage but their writes
        # are masked).  No jnp.pad, no output slice -> 1x HBM read + 1x write.
        bc = _lane_tile(total, dsize, target)
        out = _run_tanh(
            flat.reshape(1, total),
            (1, bc),
            (pl.cdiv(total, bc),),
            lambda i: (0, i),
            total,
            dsize,
        )

    return out.reshape(orig_shape)


if __name__ == "__main__":
    key = jax.random.PRNGKey(0)

    # Small shape consistent with a generic activation layer (batch=2, ch=4, 16x16).
    x = jax.random.normal(key, (2, 4, 16, 16), dtype=jnp.float32)
    y = jax.block_until_ready(pallas_tanh(x))
    assert y.shape == x.shape and y.dtype == x.dtype
    assert jnp.max(jnp.abs(y - jnp.tanh(x))) < 1e-5

    # Mid-size 128-aligned case: exercises the multi-block pipelined path.
    x1 = jax.random.normal(jax.random.PRNGKey(1), (2, 64, 32, 32), dtype=jnp.float32)
    y1 = jax.block_until_ready(pallas_tanh(x1))
    assert jnp.max(jnp.abs(y1 - jnp.tanh(x1))) < 1e-5

    # Non-128-multiple element counts: tiny (single full-extent block) and
    # mid-size (two lane blocks with a masked ragged tail) -- no pad/slice copies.
    x2 = jax.random.normal(jax.random.PRNGKey(2), (3, 5, 7), dtype=jnp.float32)
    y2 = jax.block_until_ready(pallas_tanh(x2))
    assert y2.shape == x2.shape
    assert jnp.max(jnp.abs(y2 - jnp.tanh(x2))) < 1e-5

    x3 = jax.random.normal(jax.random.PRNGKey(3), (300, 301), dtype=jnp.float32)
    y3 = jax.block_until_ready(pallas_tanh(x3))
    assert jnp.max(jnp.abs(y3 - jnp.tanh(x3))) < 1e-5

    # bf16 stays bf16 (half the HBM bytes; no wrapper pre-cast to f32).
    xb = jax.random.normal(jax.random.PRNGKey(4), (8, 256), dtype=jnp.bfloat16)
    yb = jax.block_until_ready(pallas_tanh(xb))
    assert yb.dtype == jnp.bfloat16
    assert jnp.max(jnp.abs(yb.astype(jnp.float32)
                           - jnp.tanh(xb).astype(jnp.float32))) < 2e-2

    print("KERNEL_OK")
</pallas_src>

<mosaic_0001>
module attributes {stable_mosaic.version = 11 : i64} {
  func.func @_tanh_kernel(%arg0: i32, %arg1: memref<8x256xf32, #tpu.memory_space<vmem>>, %arg2: memref<8x256xf32, #tpu.memory_space<vmem>>) attributes {dimension_semantics = [#tpu.dimension_semantics<parallel>], iteration_bounds = array<i64: 1>, scalar_prefetch = 0 : i64, scratch_operands = 0 : i64, tpu.core_type = #tpu.core_type<tc>, window_params = [{transform_indices = @transform_0, window_bounds = array<i64: 8, 256>}, {transform_indices = @transform_1, window_bounds = array<i64: 8, 256>}]} {
    %c0 = arith.constant 0 : index
    %c0_0 = arith.constant 0 : index
    %0 = vector.load %arg1[%c0, %c0_0] : memref<8x256xf32, #tpu.memory_space<vmem>>, vector<8x256xf32>
    %1 = math.tanh %0 : vector<8x256xf32>
    %c0_1 = arith.constant 0 : index
    %c0_2 = arith.constant 0 : index
    %2 = vector.load %arg2[%c0_1, %c0_2] : memref<8x256xf32, #tpu.memory_space<vmem>>, vector<8x256xf32>
    tpu.vector_store %arg2[%c0_1, %c0_2], %1 {strides = array<i32>} : memref<8x256xf32, #tpu.memory_space<vmem>>, vector<8x256xf32>,
    return
  }
  func.func @transform_0(%arg0: i32) -> (i32, i32) {
    %c0_i32 = arith.constant 0 : i32
    %c0_i32_0 = arith.constant 0 : i32
    return %arg0, %c0_i32 : i32, i32
  }
  func.func @transform_1(%arg0: i32) -> (i32, i32) {
    %c0_i32 = arith.constant 0 : i32
    %c0_i32_0 = arith.constant 0 : i32
    return %arg0, %c0_i32 : i32, i32
  }
}

</mosaic_0001>

<llo_original>
// kernel: tpu_custom_call.1
$region0: #{tpu_custom_call.1}
  #allocation0 [shape = 'u32[]', space=smem, size = 0x4, offset = 0x4, fixed_abs, tag = 'smem constant byte address 0x4 - core index']
  #allocation1 [shape = 'u32[72,128]{1,0:T(1,128)}', space=vmem, size = 0x9000, scoped, tag = 'internal scratch']
  %s0 = inlined_call_operand.hbm [shape: f32[8,256], index: 0, kind: input, shape index: {}]
  %s1 = inlined_call_operand.hbm [shape: f32[8,256], index: 1, kind: output, shape index: {}]
  %s2 = sld [smem:[#allocation0]]
  $region18: #{tpu_custom_call.1} parent=0
    _
  %s4 = ssub.s32 1, %s2
  %s5 = scalar_select 0, %s4, %s2
  $region1: #{tpu_custom_call.1} parent=0
    #allocation2 [shape = 'u8[8192]{0}', space=vmem, size = 0x2000, scoped, tag = 'input window, operand 0, single buffered']
    #allocation3 [shape = 's32[1]{0}', space=sflag, size = 0x4, scoped, tag = 'scoped memory for tpu_custom_call.1']
    #allocation4 [shape = 's32[1]{0}', space=sflag, size = 0x4, scoped, tag = 'scoped memory for tpu_custom_call.1']
    #allocation5 [shape = 'u8[8192]{0}', space=vmem, size = 0x2000, scoped, tag = 'output window, operand 0, single buffered']
    %6 = vsyncpa [#allocation3], 0
    %7 = vsyncpa [#allocation4], 0
    // Predicated region
    $region2: #{tpu_custom_call.1} parent=1 // pred_check
      _
    $region3: #{tpu_custom_call.1} parent=1 // pred_check_branch
      %9 = sbr.rel (0) target = $region5
    $region4: #{tpu_custom_call.1} parent=1 // pred_region
      %11 = vsyncadd [#allocation3], 0
      %s13 = sshll.u32 %s0, 4
      %s14 = int_to_ptr.hbm [resolvable:$true] %s13
      %s15 = sshll.u32 [#allocation2], 4
      %s16 = int_to_ptr.vmem [resolvable:$true] %s15
      %18 = dma.hbm_to_vmem [thread:$0]  %s14, 256, %s16, [#allocation3]
    $region5: #{tpu_custom_call.1} parent=1 // pred_fallthru
      _
    // Predicated region
    $region6: #{tpu_custom_call.1} parent=1 // pred_check
      _
    $region7: #{tpu_custom_call.1} parent=1 // pred_check_branch
      %20 = sbr.rel (0) target = $region9
    $region8: #{tpu_custom_call.1} parent=1 // pred_region
      %22 = dma.done [#allocation3], 256
    $region9: #{tpu_custom_call.1} parent=1 // pred_fallthru
      _
    %v23 = vld [vmem:[#allocation2] sm:$0xff]
    %v24 = vld [vmem:[#allocation2 + $0x8] sm:$0xff]
    %v25 = vtanh.pop %v23
    %v26 = vtanh.pop %v24
    %27 = vst [vmem:[#allocation5] sm:$0xff] %v25
    %28 = vst [vmem:[#allocation5 + $0x8] sm:$0xff] %v26
    // Predicated region
    $region10: #{tpu_custom_call.1} parent=1 // pred_check
      _
    $region11: #{tpu_custom_call.1} parent=1 // pred_check_branch
      %30 = sbr.rel (0) target = $region13
    $region12: #{tpu_custom_call.1} parent=1 // pred_region
      %32 = vsyncadd [#allocation4], 0
      %s34 = sshll.u32 [#allocation5], 4
      %s35 = int_to_ptr.vmem [resolvable:$true] %s34
      %s36 = sshll.u32 %s1, 4
      %s37 = int_to_ptr.hbm [resolvable:$true] %s36
      %39 = dma.vmem_to_hbm [thread:$0]  %s35, 256, %s37, [#allocation4]
    $region13: #{tpu_custom_call.1} parent=1 // pred_fallthru
      _
    // Predicated region
    $region14: #{tpu_custom_call.1} parent=1 // pred_check
      _
    $region15: #{tpu_custom_call.1} parent=1 // pred_check_branch
      %41 = sbr.rel (0) target = $region17
    $region16: #{tpu_custom_call.1} parent=1 // pred_region
      %43 = dma.done [#allocation4], 256
    $region17: #{tpu_custom_call.1} parent=1 // pred_fallthru
      _
    %44 = vsyncpa [#allocation3], 1
    %45 = vsyncpa [#allocation4], 1

</llo_original>
